<compile_context>
chip_gen: v7x
topology: tpu7x:2x2x1
jax: 0.10.0
libtpu: 0.0.40
codegen_flags: <defaults>
</compile_context>

<pallas_src>
import functools
import math

import jax
import jax.numpy as jnp
from jax.experimental import pallas as pl
from jax.experimental.pallas import tpu as pltpu


def _cdiv(a, b):
    return -(-a // b)


def _round_up(x, m):
    return (x + m - 1) // m * m


def _pick_lanes(padded_feat):
    """Largest lane width in {2048..128} dividing padded_feat, preferring one
    that leaves at least 8 rows so vreg sublanes are fully used."""
    best = None
    for cand in (2048, 1024, 512, 256, 128):
        if padded_feat % cand == 0:
            if best is None:
                best = cand
            if padded_feat // cand >= 8:
                return cand
    return best  # padded_feat is a multiple of 128, so best is never None


def _largest_divisor_leq(n, cap):
    cap = max(1, min(n, cap))
    for d in range(cap, 0, -1):
        if n % d == 0:
            return d
    return 1


def _vmem_budget():
    """(tile_bytes per input block, vmem_limit_bytes), generation aware."""
    try:
        cap = pltpu.get_tpu_info().vmem_capacity_bytes
    except Exception:
        cap = 64 << 20  # conservative fallback
    if cap <= (64 << 20):
        # v7x-class: 64 MiB physical VMEM, ~3.2 TB/s HBM. 2 inputs x 2 buffers
        # x 8 MiB = 32 MiB + scratch, so raise the scoped-VMEM limit explicitly.
        return 8 << 20, 48 << 20
    # v5e/v6e: 128 MiB physical VMEM; 4 MiB tiles, limit raised for headroom
    # (also covers v5e's small 16 MiB default scoped limit).
    return 4 << 20, 40 << 20


def _dice_sums_kernel(x_ref, t_ref, out_ref, acc_i, acc_1, acc_2,
                      *, ks, total_tiles, r_valid):
    """One (batch-block, split, feature-tile) grid step.

    x_ref, t_ref : (B_TILE, r_tile, lanes) blocks, native dtype.
    out_ref      : (1, B_TILE, 8, 128) f32; rows 0-2 = inter/m1/m2 sums.
    acc_*        : (B_TILE, 8, lanes) f32 VMEM accumulators.
    """
    s = pl.program_id(1)
    k = pl.program_id(2)
    bt, r_tile, lanes = x_ref.shape

    @pl.when(k == 0)
    def _init():
        acc_i[...] = jnp.zeros_like(acc_i)
        acc_1[...] = jnp.zeros_like(acc_1)
        acc_2[...] = jnp.zeros_like(acc_2)

    x = x_ref[...]
    t = t_ref[...]
    # sigmoid(x) > 0.5  <=>  x > 0  (sigmoid monotone, sigmoid(0)=0.5): no EUP.
    m1 = (x > 0).astype(jnp.float32)
    m2 = (t > 0.5).astype(jnp.float32)

    def _accumulate(m1v, m2v):
        interv = m1v * m2v
        if r_tile % 8 == 0:
            # Full-vreg VPU adds over 8-row groups; no per-step XLU reduce.
            def red(a):
                if r_tile == 8:
                    return a
                return jnp.sum(a.reshape(bt, r_tile // 8, 8, lanes), axis=1)
            acc_i[...] += red(interv)
            acc_1[...] += red(m1v)
            acc_2[...] += red(m2v)
        else:
            # Rare single-step case (r_tile == full rows, not a multiple of 8).
            acc_i[:, 0:1, :] += jnp.sum(interv, axis=1, keepdims=True)
            acc_1[:, 0:1, :] += jnp.sum(m1v, axis=1, keepdims=True)
            acc_2[:, 0:1, :] += jnp.sum(m2v, axis=1, keepdims=True)

    if r_valid % r_tile != 0:
        # Only the very last feature tile reads rows past r_valid; gate the
        # masked path there so interior tiles accumulate unmasked.
        last = total_tiles - 1
        g_tile = s * ks + k  # global feature-tile index of this step

        @pl.when(g_tile != last)
        def _interior():
            _accumulate(m1, m2)

        @pl.when(g_tile == last)
        def _boundary():
            row = (jax.lax.broadcasted_iota(jnp.int32, m1.shape, 1)
                   + last * r_tile)
            keep = (row < r_valid).astype(jnp.float32)
            _accumulate(m1 * keep, m2 * keep)
    else:
        _accumulate(m1, m2)

    @pl.when(k == ks - 1)
    def _finish():
        def collapse(acc):  # (bt, 8, lanes) -> (bt, 1, 1)
            return jnp.sum(jnp.sum(acc[...], axis=2, keepdims=True),
                           axis=1, keepdims=True)
        s_i = collapse(acc_i)
        s_1 = collapse(acc_1)
        s_2 = collapse(acc_2)
        row = jax.lax.broadcasted_iota(jnp.int32, (bt, 8, 128), 1)
        out = jnp.where(row == 0, s_i,
              jnp.where(row == 1, s_1,
              jnp.where(row == 2, s_2, jnp.float32(0.0))))
        out_ref[...] = out[None]


def _dice_sums_pallas(logits, targets, *, tile_bytes=None):
    num = logits.shape[0]
    feat = math.prod(logits.shape[1:])

    auto_tile, vmem_limit = _vmem_budget()
    if tile_bytes is None:
        tile_bytes = auto_tile

    l2 = logits.reshape(num, feat)
    t2 = targets.reshape(num, feat)

    pf = _round_up(feat, 128)
    if pf != feat:
        # Rare for segmentation shapes. Logits pad with -1 (-> m1 False),
        # targets with 0 (-> m2 False): padding contributes nothing.
        # TODO(synk): replace this wrapper-side pad (an extra full HBM
        # read+write) with an in-kernel lane mask on the last tile.
        l2 = jnp.pad(l2, ((0, 0), (0, pf - feat)), constant_values=-1)
        t2 = jnp.pad(t2, ((0, 0), (0, pf - feat)), constant_values=0)

    lanes = _pick_lanes(pf)
    rows = pf // lanes
    itemsize = max(jnp.dtype(logits.dtype).itemsize,
                   jnp.dtype(targets.dtype).itemsize)

    # --- feature tiling: rows per grid step (one sample) ---------------------
    rows_budget = max(8, (tile_bytes // (lanes * itemsize)) // 8 * 8)
    if rows <= rows_budget:
        r_tile, k_steps = rows, 1
    else:
        r_tile, k_steps = rows_budget, _cdiv(rows, rows_budget)

    # --- batch blocking: pack several small samples per grid step ------------
    if k_steps == 1:
        b_in = tile_bytes // max(1, rows * lanes * itemsize)
        b_acc = tile_bytes // (2 * 3 * 8 * lanes * 4)   # f32 accumulator guard
        b_tile = _largest_divisor_leq(num, max(1, min(b_in, b_acc)))
    else:
        b_tile = 1
    nb = num // b_tile

    # --- optional 2-way feature split so both TCs work at batch==1 (v7x) -----
    n_split = 1
    if nb == 1 and k_steps >= 2:
        if k_steps % 2 == 1:
            # Shrink r_tile slightly (never below half) to make k_steps even.
            for rt in range(r_tile - 8, max(8, r_tile // 2) - 1, -8):
                if _cdiv(rows, rt) % 2 == 0:
                    r_tile, k_steps = rt, _cdiv(rows, rt)
                    break
        if k_steps % 2 == 0:
            n_split = 2
    ks = k_steps // n_split

    l3 = l2.reshape(num, rows, lanes)   # contiguous reshape: no data movement
    t3 = t2.reshape(num, rows, lanes)

    kernel = functools.partial(_dice_sums_kernel, ks=ks,
                               total_tiles=k_steps, r_valid=rows)

    in_spec = pl.BlockSpec((b_tile, r_tile, lanes),
                           lambda b, s, k: (b, s * ks + k, 0))
    out_spec = pl.BlockSpec((1, b_tile, 8, 128),
                            lambda b, s, k: (s, b, 0, 0))

    out = pl.pallas_call(
        kernel,
        out_shape=jax.ShapeDtypeStruct((n_split, num, 8, 128), jnp.float32),
        grid=(nb, n_split, ks),
        in_specs=[in_spec, in_spec],
        out_specs=out_spec,
        scratch_shapes=[pltpu.VMEM((b_tile, 8, lanes), jnp.float32)
                        for _ in range(3)],
        compiler_params=pltpu.CompilerParams(
            dimension_semantics=("parallel", "parallel", "arbitrary"),
            vmem_limit_bytes=vmem_limit),
    )(l3, t3)

    sums = jnp.sum(out, axis=0)               # combine split partials
    return sums[:, 0, 0], sums[:, 1, 0], sums[:, 2, 0]


def _dice_sums_reference(logits, targets):
    num = logits.shape[0]
    m1 = (logits.reshape(num, -1) > 0).astype(jnp.float32)
    m2 = (targets.reshape(num, -1) > 0.5).astype(jnp.float32)
    return jnp.sum(m1 * m2, axis=1), jnp.sum(m1, axis=1), jnp.sum(m2, axis=1)


def _finalize(inter_s, m1_s, m2_s, num, feat, smooth):
    """Scalar glue combining per-sample sums into the 8 returned metrics.
    Note: like the PyTorch reference, ratios can be NaN if a class is absent."""
    score = 2.0 * (inter_s + smooth) / (m1_s + m2_s + smooth)
    score = jnp.sum(score) / num

    tp = jnp.sum(inter_s)
    fp = jnp.sum(m1_s) - tp
    fn = jnp.sum(m2_s) - tp
    tn = jnp.float32(num * feat) - tp - fp - fn

    SENS = tp / (tp + fn)
    SPEC = tn / (tn + fp)
    EF = fp / (tn + fn)
    IOU = tp / (tp + fn + fp)
    DSC = 2.0 * tp / (2.0 * tp + fp + fn)
    PPV = tp / (tp + fp)
    NPV = tn / (tn + fn)
    return score, SENS, SPEC, EF, IOU, DSC, PPV, NPV


def dice_score(logits, targets, smooth=1.0, force_pallas=False, tile_bytes=None):
    """Reproduces DiceScore.forward(logits, targets, sigmoid=True)."""
    num = logits.shape[0]
    feat = math.prod(logits.shape[1:])

    if force_pallas or num * feat >= (1 << 20):
        inter_s, m1_s, m2_s = _dice_sums_pallas(logits, targets,
                                                tile_bytes=tile_bytes)
    else:
        # Tiny problems: launch/per-step overhead dominates; XLA's fused
        # elementwise + reduce is at least as fast, no tiling concerns.
        inter_s, m1_s, m2_s = _dice_sums_reference(logits, targets)

    return _finalize(inter_s, m1_s, m2_s, num, feat, smooth)


if __name__ == "__main__":
    key = jax.random.PRNGKey(0)

    def _reference(logits, targets, smooth=1.0):
        num = logits.shape[0]
        feat = math.prod(logits.shape[1:])
        probs = jax.nn.sigmoid(logits)
        m1 = (probs.reshape(num, -1) > 0.5).astype(jnp.float32)
        m2 = (targets.reshape(num, -1) > 0.5).astype(jnp.float32)
        inter = jnp.sum(m1 * m2, axis=1)
        return _finalize(inter, jnp.sum(m1, axis=1), jnp.sum(m2, axis=1),
                         num, feat, smooth)

    # (shape, tile_bytes override): the overrides force the multi-tile paths
    # (2-way TC split, gated boundary mask, 8-row-group accumulate) at small
    # test sizes; None uses the generation-aware production tiling.
    cases = [
        ((2, 4, 16, 16), None),   # batch-blocked single-tile path
        ((1, 2, 24, 24), 4096),   # 2-way split + boundary row mask
        ((1, 33, 8, 16), 8192),   # multi-step reduction + grouped accumulate
    ]

    for idx, (shape, tile_bytes) in enumerate(cases):
        k1, k2 = jax.random.split(jax.random.fold_in(key, idx))
        logits = jax.random.normal(k1, shape, dtype=jnp.float32)
        targets = (jax.random.uniform(k2, shape) > 0.5).astype(jnp.float32)

        got = dice_score(logits, targets, smooth=1.0, force_pallas=True,
                         tile_bytes=tile_bytes)
        got = jax.block_until_ready(got)
        want = _reference(logits, targets, 1.0)

        for g, w in zip(got, want):
            assert jnp.allclose(g, w, atol=1e-5, rtol=1e-5), (shape, g, w)

    print("KERNEL_OK")
</pallas_src>

<mosaic_0001>
module attributes {stable_mosaic.version = 11 : i64} {
  func.func @_dice_sums_kernel(%arg0: i32, %arg1: i32, %arg2: i32, %arg3: memref<2x8x128xf32, #tpu.memory_space<vmem>>, %arg4: memref<2x8x128xf32, #tpu.memory_space<vmem>>, %arg5: memref<1x2x8x128xf32, #tpu.memory_space<vmem>>, %arg6: memref<2x8x128xf32, #tpu.memory_space<vmem>>, %arg7: memref<2x8x128xf32, #tpu.memory_space<vmem>>, %arg8: memref<2x8x128xf32, #tpu.memory_space<vmem>>) attributes {dimension_semantics = [#tpu.dimension_semantics<parallel>, #tpu.dimension_semantics<parallel>, #tpu.dimension_semantics<arbitrary>], iteration_bounds = array<i64: 1, 1, 1>, scalar_prefetch = 0 : i64, scratch_operands = 3 : i64, tpu.core_type = #tpu.core_type<tc>, window_params = [{transform_indices = @transform_0, window_bounds = array<i64: 2, 8, 128>}, {transform_indices = @transform_1, window_bounds = array<i64: 2, 8, 128>}, {transform_indices = @transform_2, window_bounds = array<i64: 1, 2, 8, 128>}]} {
    %c0_i32 = arith.constant 0 : i32
    %0 = arith.cmpi eq, %arg2, %c0_i32 : i32
    %1 = arith.extui %0 : i1 to i32
    %c0_i32_0 = arith.constant 0 : i32
    %2 = arith.cmpi ne, %1, %c0_i32_0 : i32
    scf.if %2 {
      %cst_27 = arith.constant 0.000000e+00 : f32
      %26 = vector.broadcast %cst_27 : f32 to vector<2x8x128xf32>
      %c0_28 = arith.constant 0 : index
      %c0_29 = arith.constant 0 : index
      %c0_30 = arith.constant 0 : index
      %27 = vector.load %arg6[%c0_28, %c0_29, %c0_30] : memref<2x8x128xf32, #tpu.memory_space<vmem>>, vector<2x8x128xf32>
      tpu.vector_store %arg6[%c0_28, %c0_29, %c0_30], %26 {strides = array<i32>} : memref<2x8x128xf32, #tpu.memory_space<vmem>>, vector<2x8x128xf32>,
      %cst_31 = arith.constant 0.000000e+00 : f32
      %28 = vector.broadcast %cst_31 : f32 to vector<2x8x128xf32>
      %c0_32 = arith.constant 0 : index
      %c0_33 = arith.constant 0 : index
      %c0_34 = arith.constant 0 : index
      %29 = vector.load %arg7[%c0_32, %c0_33, %c0_34] : memref<2x8x128xf32, #tpu.memory_space<vmem>>, vector<2x8x128xf32>
      tpu.vector_store %arg7[%c0_32, %c0_33, %c0_34], %28 {strides = array<i32>} : memref<2x8x128xf32, #tpu.memory_space<vmem>>, vector<2x8x128xf32>,
      %cst_35 = arith.constant 0.000000e+00 : f32
      %30 = vector.broadcast %cst_35 : f32 to vector<2x8x128xf32>
      %c0_36 = arith.constant 0 : index
      %c0_37 = arith.constant 0 : index
      %c0_38 = arith.constant 0 : index
      %31 = vector.load %arg8[%c0_36, %c0_37, %c0_38] : memref<2x8x128xf32, #tpu.memory_space<vmem>>, vector<2x8x128xf32>
      tpu.vector_store %arg8[%c0_36, %c0_37, %c0_38], %30 {strides = array<i32>} : memref<2x8x128xf32, #tpu.memory_space<vmem>>, vector<2x8x128xf32>,
    } else {
    }
    %c0 = arith.constant 0 : index
    %c0_1 = arith.constant 0 : index
    %c0_2 = arith.constant 0 : index
    %3 = vector.load %arg3[%c0, %c0_1, %c0_2] : memref<2x8x128xf32, #tpu.memory_space<vmem>>, vector<2x8x128xf32>
    %c0_3 = arith.constant 0 : index
    %c0_4 = arith.constant 0 : index
    %c0_5 = arith.constant 0 : index
    %4 = vector.load %arg4[%c0_3, %c0_4, %c0_5] : memref<2x8x128xf32, #tpu.memory_space<vmem>>, vector<2x8x128xf32>
    %cst = arith.constant 0.000000e+00 : f32
    %5 = vector.broadcast %cst : f32 to vector<2x8x128xf32>
    %6 = arith.cmpf ogt, %3, %5 : vector<2x8x128xf32>
    %7 = arith.extui %6 : vector<2x8x128xi1> to vector<2x8x128xi32>
    %8 = arith.sitofp %7 : vector<2x8x128xi32> to vector<2x8x128xf32>
    %cst_6 = arith.constant 5.000000e-01 : f32
    %9 = vector.broadcast %cst_6 : f32 to vector<2x8x128xf32>
    %10 = arith.cmpf ogt, %4, %9 : vector<2x8x128xf32>
    %11 = arith.extui %10 : vector<2x8x128xi1> to vector<2x8x128xi32>
    %12 = arith.sitofp %11 : vector<2x8x128xi32> to vector<2x8x128xf32>
    %13 = arith.mulf %8, %12 : vector<2x8x128xf32>
    %c0_7 = arith.constant 0 : index
    %c0_8 = arith.constant 0 : index
    %c0_9 = arith.constant 0 : index
    %14 = vector.load %arg6[%c0_7, %c0_8, %c0_9] : memref<2x8x128xf32, #tpu.memory_space<vmem>>, vector<2x8x128xf32>
    %15 = arith.addf %14, %13 : vector<2x8x128xf32>
    %c0_10 = arith.constant 0 : index
    %c0_11 = arith.constant 0 : index
    %c0_12 = arith.constant 0 : index
    %16 = vector.load %arg6[%c0_10, %c0_11, %c0_12] : memref<2x8x128xf32, #tpu.memory_space<vmem>>, vector<2x8x128xf32>
    tpu.vector_store %arg6[%c0_10, %c0_11, %c0_12], %15 {strides = array<i32>} : memref<2x8x128xf32, #tpu.memory_space<vmem>>, vector<2x8x128xf32>,
    %c0_13 = arith.constant 0 : index
    %c0_14 = arith.constant 0 : index
    %c0_15 = arith.constant 0 : index
    %17 = vector.load %arg7[%c0_13, %c0_14, %c0_15] : memref<2x8x128xf32, #tpu.memory_space<vmem>>, vector<2x8x128xf32>
    %18 = arith.addf %17, %8 : vector<2x8x128xf32>
    %c0_16 = arith.constant 0 : index
    %c0_17 = arith.constant 0 : index
    %c0_18 = arith.constant 0 : index
    %19 = vector.load %arg7[%c0_16, %c0_17, %c0_18] : memref<2x8x128xf32, #tpu.memory_space<vmem>>, vector<2x8x128xf32>
    tpu.vector_store %arg7[%c0_16, %c0_17, %c0_18], %18 {strides = array<i32>} : memref<2x8x128xf32, #tpu.memory_space<vmem>>, vector<2x8x128xf32>,
    %c0_19 = arith.constant 0 : index
    %c0_20 = arith.constant 0 : index
    %c0_21 = arith.constant 0 : index
    %20 = vector.load %arg8[%c0_19, %c0_20, %c0_21] : memref<2x8x128xf32, #tpu.memory_space<vmem>>, vector<2x8x128xf32>
    %21 = arith.addf %20, %12 : vector<2x8x128xf32>
    %c0_22 = arith.constant 0 : index
    %c0_23 = arith.constant 0 : index
    %c0_24 = arith.constant 0 : index
    %22 = vector.load %arg8[%c0_22, %c0_23, %c0_24] : memref<2x8x128xf32, #tpu.memory_space<vmem>>, vector<2x8x128xf32>
    tpu.vector_store %arg8[%c0_22, %c0_23, %c0_24], %21 {strides = array<i32>} : memref<2x8x128xf32, #tpu.memory_space<vmem>>, vector<2x8x128xf32>,
    %c0_i32_25 = arith.constant 0 : i32
    %23 = arith.cmpi eq, %arg2, %c0_i32_25 : i32
    %24 = arith.extui %23 : i1 to i32
    %c0_i32_26 = arith.constant 0 : i32
    %25 = arith.cmpi ne, %24, %c0_i32_26 : i32
    scf.if %25 {
      %c0_27 = arith.constant 0 : index
      %c0_28 = arith.constant 0 : index
      %c0_29 = arith.constant 0 : index
      %26 = vector.load %arg6[%c0_27, %c0_28, %c0_29] : memref<2x8x128xf32, #tpu.memory_space<vmem>>, vector<2x8x128xf32>
      %cst_30 = arith.constant dense<0.000000e+00> : vector<2x8xf32>
      %27 = vector.multi_reduction <add>, %26, %cst_30 [2] : vector<2x8x128xf32> to vector<2x8xf32>
      %28 = vector.shape_cast %27 : vector<2x8xf32> to vector<2x8x1xf32>
      %cst_31 = arith.constant dense<0.000000e+00> : vector<2x1xf32>
      %29 = vector.multi_reduction <add>, %28, %cst_31 [1] : vector<2x8x1xf32> to vector<2x1xf32>
      %30 = vector.shape_cast %29 : vector<2x1xf32> to vector<2x1x1xf32>
      %c0_32 = arith.constant 0 : index
      %c0_33 = arith.constant 0 : index
      %c0_34 = arith.constant 0 : index
      %31 = vector.load %arg7[%c0_32, %c0_33, %c0_34] : memref<2x8x128xf32, #tpu.memory_space<vmem>>, vector<2x8x128xf32>
      %cst_35 = arith.constant dense<0.000000e+00> : vector<2x8xf32>
      %32 = vector.multi_reduction <add>, %31, %cst_35 [2] : vector<2x8x128xf32> to vector<2x8xf32>
      %33 = vector.shape_cast %32 : vector<2x8xf32> to vector<2x8x1xf32>
      %cst_36 = arith.constant dense<0.000000e+00> : vector<2x1xf32>
      %34 = vector.multi_reduction <add>, %33, %cst_36 [1] : vector<2x8x1xf32> to vector<2x1xf32>
      %35 = vector.shape_cast %34 : vector<2x1xf32> to vector<2x1x1xf32>
      %c0_37 = arith.constant 0 : index
      %c0_38 = arith.constant 0 : index
      %c0_39 = arith.constant 0 : index
      %36 = vector.load %arg8[%c0_37, %c0_38, %c0_39] : memref<2x8x128xf32, #tpu.memory_space<vmem>>, vector<2x8x128xf32>
      %cst_40 = arith.constant dense<0.000000e+00> : vector<2x8xf32>
      %37 = vector.multi_reduction <add>, %36, %cst_40 [2] : vector<2x8x128xf32> to vector<2x8xf32>
      %38 = vector.shape_cast %37 : vector<2x8xf32> to vector<2x8x1xf32>
      %cst_41 = arith.constant dense<0.000000e+00> : vector<2x1xf32>
      %39 = vector.multi_reduction <add>, %38, %cst_41 [1] : vector<2x8x1xf32> to vector<2x1xf32>
      %40 = vector.shape_cast %39 : vector<2x1xf32> to vector<2x1x1xf32>
      %41 = tpu.iota {dimensions = array<i32: 1>} : vector<2x8x128xi32>
      %c0_i32_42 = arith.constant 0 : i32
      %42 = vector.broadcast %c0_i32_42 : i32 to vector<2x8x128xi32>
      %43 = arith.cmpi eq, %41, %42 : vector<2x8x128xi32>
      %c1_i32 = arith.constant 1 : i32
      %44 = vector.broadcast %c1_i32 : i32 to vector<2x8x128xi32>
      %45 = arith.cmpi eq, %41, %44 : vector<2x8x128xi32>
      %c2_i32 = arith.constant 2 : i32
      %46 = vector.broadcast %c2_i32 : i32 to vector<2x8x128xi32>
      %47 = arith.cmpi eq, %41, %46 : vector<2x8x128xi32>
      %cst_43 = arith.constant 0.000000e+00 : f32
      %48 = vector.shape_cast %40 : vector<2x1x1xf32> to vector<2x1x1xf32>
      %49 = vector.broadcast %48 : vector<2x1x1xf32> to vector<2x8x128xf32>
      %50 = vector.broadcast %cst_43 : f32 to vector<2x8x128xf32>
      %51 = arith.select %47, %49, %50 : vector<2x8x128xi1>, vector<2x8x128xf32>
      %52 = vector.shape_cast %35 : vector<2x1x1xf32> to vector<2x1x1xf32>
      %53 = vector.broadcast %52 : vector<2x1x1xf32> to vector<2x8x128xf32>
      %54 = arith.select %45, %53, %51 : vector<2x8x128xi1>, vector<2x8x128xf32>
      %55 = vector.shape_cast %30 : vector<2x1x1xf32> to vector<2x1x1xf32>
      %56 = vector.broadcast %55 : vector<2x1x1xf32> to vector<2x8x128xf32>
      %57 = arith.select %43, %56, %54 : vector<2x8x128xi1>, vector<2x8x128xf32>
      %58 = vector.shape_cast %57 : vector<2x8x128xf32> to vector<1x2x8x128xf32>
      %c0_44 = arith.constant 0 : index
      %c0_45 = arith.constant 0 : index
      %c0_46 = arith.constant 0 : index
      %c0_47 = arith.constant 0 : index
      %59 = vector.load %arg5[%c0_44, %c0_45, %c0_46, %c0_47] : memref<1x2x8x128xf32, #tpu.memory_space<vmem>>, vector<1x2x8x128xf32>
      tpu.vector_store %arg5[%c0_44, %c0_45, %c0_46, %c0_47], %58 {strides = array<i32>} : memref<1x2x8x128xf32, #tpu.memory_space<vmem>>, vector<1x2x8x128xf32>,
    } else {
    }
    return
  }
  func.func @transform_0(%arg0: i32, %arg1: i32, %arg2: i32) -> (i32, i32, i32) {
    %c1_i32 = arith.constant 1 : i32
    %0 = arith.muli %arg1, %c1_i32 : i32
    %1 = arith.addi %0, %arg2 : i32
    %c0_i32 = arith.constant 0 : i32
    %c0_i32_0 = arith.constant 0 : i32
    return %arg0, %1, %c0_i32 : i32, i32, i32
  }
  func.func @transform_1(%arg0: i32, %arg1: i32, %arg2: i32) -> (i32, i32, i32) {
    %c1_i32 = arith.constant 1 : i32
    %0 = arith.muli %arg1, %c1_i32 : i32
    %1 = arith.addi %0, %arg2 : i32
    %c0_i32 = arith.constant 0 : i32
    %c0_i32_0 = arith.constant 0 : i32
    return %arg0, %1, %c0_i32 : i32, i32, i32
  }
  func.func @transform_2(%arg0: i32, %arg1: i32, %arg2: i32) -> (i32, i32, i32, i32) {
    %c0_i32 = arith.constant 0 : i32
    %c0_i32_0 = arith.constant 0 : i32
    %c0_i32_1 = arith.constant 0 : i32
    return %arg1, %arg0, %c0_i32, %c0_i32_0 : i32, i32, i32, i32
  }
}

</mosaic_0001>

<llo_original>
// kernel: tpu_custom_call.1
$region0: #{tpu_custom_call.1}
  #allocation0 [shape = 'u32[]', space=smem, size = 0x4, offset = 0x4, fixed_abs, tag = 'smem constant byte address 0x4 - core index']
  #allocation1 [shape = 'u32[144,128]{1,0:T(1,128)}', space=vmem, size = 0x12000, scoped, tag = 'internal scratch']
  #allocation2 [shape = 'f32[2,8,128]{2,1,0:T(8,128)}', space=vmem, size = 0x2000, scoped, tag = 'scratch operand']
  #allocation3 [shape = 'f32[2,8,128]{2,1,0:T(8,128)}', space=vmem, size = 0x2000, scoped, tag = 'scratch operand']
  #allocation4 [shape = 'f32[2,8,128]{2,1,0:T(8,128)}', space=vmem, size = 0x2000, scoped, tag = 'scratch operand']
  %s0 = inlined_call_operand.hbm [shape: f32[2,8,128], index: 0, kind: input, shape index: {}]
  %s1 = inlined_call_operand.hbm [shape: f32[2,8,128], index: 1, kind: input, shape index: {}]
  %s2 = inlined_call_operand.hbm [shape: f32[1,2,8,128], index: 2, kind: output, shape index: {}]
  %s3 = sld [smem:[#allocation0]]
  $region34: #{tpu_custom_call.1} parent=0
    _
  %s5 = ssub.s32 1, %s3
  %s6 = scalar_select 0, %s5, %s3
  $region1: #{tpu_custom_call.1} parent=0
    #allocation5 [shape = 'u8[8192]{0}', space=vmem, size = 0x2000, scoped, tag = 'input window, operand 0, single buffered']
    #allocation6 [shape = 's32[1]{0}', space=sflag, size = 0x4, scoped, tag = 'scoped memory for tpu_custom_call.1']
    #allocation7 [shape = 's32[1]{0}', space=sflag, size = 0x4, scoped, tag = 'scoped memory for tpu_custom_call.1']
    #allocation8 [shape = 'u8[8192]{0}', space=vmem, size = 0x2000, scoped, tag = 'input window, operand 1, single buffered']
    #allocation9 [shape = 's32[1]{0}', space=sflag, size = 0x4, scoped, tag = 'scoped memory for tpu_custom_call.1']
    #allocation10 [shape = 'u8[8192]{0}', space=vmem, size = 0x2000, scoped, tag = 'output window, operand 0, single buffered']
    %7 = vsyncpa [#allocation6], 0
    %8 = vsyncpa [#allocation9], 0
    %9 = vsyncpa [#allocation7], 0
    // Predicated region
    $region2: #{tpu_custom_call.1} parent=1 // pred_check
      _
    $region3: #{tpu_custom_call.1} parent=1 // pred_check_branch
      %11 = sbr.rel (0) target = $region5
    $region4: #{tpu_custom_call.1} parent=1 // pred_region
      %s12 = sadd.s32 0, 0
      %s14 = ssub.s32 256, 256
      %15 = vsyncadd [#allocation6], %s14
      %s16 = smul.addr %s12, 128
      %s17 = scalar_lea.hbm %s0, %s16
      %s18 = sshll.u32 [#allocation5], 4
      %s19 = int_to_ptr.vmem [resolvable:$true] %s18
      %24 = dma.hbm_to_vmem [thread:$0]  %s17, 256, %s19, [#allocation6], 128, 128, 8
    $region5: #{tpu_custom_call.1} parent=1 // pred_fallthru
      _
    // Predicated region
    $region6: #{tpu_custom_call.1} parent=1 // pred_check
      _
    $region7: #{tpu_custom_call.1} parent=1 // pred_check_branch
      %26 = sbr.rel (0) target = $region9
    $region8: #{tpu_custom_call.1} parent=1 // pred_region
      %s27 = sadd.s32 0, 0
      %s29 = ssub.s32 256, 256
      %30 = vsyncadd [#allocation9], %s29
      %s31 = smul.addr %s27, 128
      %s32 = scalar_lea.hbm %s1, %s31
      %s33 = sshll.u32 [#allocation8], 4
      %s34 = int_to_ptr.vmem [resolvable:$true] %s33
      %39 = dma.hbm_to_vmem [thread:$0]  %s32, 256, %s34, [#allocation9], 128, 128, 8
    $region9: #{tpu_custom_call.1} parent=1 // pred_fallthru
      _
    // Predicated region
    $region10: #{tpu_custom_call.1} parent=1 // pred_check
      _
    $region11: #{tpu_custom_call.1} parent=1 // pred_check_branch
      %41 = sbr.rel (0) target = $region13
    $region12: #{tpu_custom_call.1} parent=1 // pred_region
      %42 = dma.done [#allocation6], 256
    $region13: #{tpu_custom_call.1} parent=1 // pred_fallthru
      _
    // Predicated region
    $region14: #{tpu_custom_call.1} parent=1 // pred_check
      _
    $region15: #{tpu_custom_call.1} parent=1 // pred_check_branch
      %44 = sbr.rel (0) target = $region17
    $region16: #{tpu_custom_call.1} parent=1 // pred_region
      %45 = dma.done [#allocation9], 256
    $region17: #{tpu_custom_call.1} parent=1 // pred_fallthru
      _
    %s46 = sadd.s32 0, 0
    %s47 = sadd.s32 0, 0
    %p48 = scmp.eq.s32.totalorder 0, 0
    // Predicated region
    $region18: #{tpu_custom_call.1} parent=1 // pred_check
      %p49 = pneg %p48
    $region19: #{tpu_custom_call.1} parent=1 // pred_check_branch
      %51 = sbr.rel (%p49) target = $region21
    $region20: #{tpu_custom_call.1} parent=1 // pred_region
      %52 = vst [vmem:[#allocation2] sm:$0xff] 0.0
      %53 = vst [vmem:[#allocation2 + $0x8] sm:$0xff] 0.0
      %54 = vst [vmem:[#allocation3] sm:$0xff] 0.0
      %55 = vst [vmem:[#allocation3 + $0x8] sm:$0xff] 0.0
      %56 = vst [vmem:[#allocation4] sm:$0xff] 0.0
      %57 = vst [vmem:[#allocation4 + $0x8] sm:$0xff] 0.0
    $region21: #{tpu_custom_call.1} parent=1 // pred_fallthru
      _
    %v58 = vld [vmem:[#allocation5] sm:$0xff]
    %v59 = vld [vmem:[#allocation5 + $0x8] sm:$0xff]
    %v60 = vld [vmem:[#allocation8] sm:$0xff]
    %v61 = vld [vmem:[#allocation8 + $0x8] sm:$0xff]
    %vm62 = vcmp.gt.f32.partialorder %v58, 0.0
    %vm63 = vcmp.gt.f32.partialorder %v59, 0.0
    %v64 = vsel %vm62, 1, 0
    %v65 = vsel %vm63, 1, 0
    %v66 = vcvt.s32.f32 %v64
    %v67 = vcvt.s32.f32 %v65
    %vm68 = vcmp.gt.f32.partialorder %v60, 0.5
    %vm69 = vcmp.gt.f32.partialorder %v61, 0.5
    %v70 = vsel %vm68, 1, 0
    %v71 = vsel %vm69, 1, 0
    %v72 = vcvt.s32.f32 %v70
    %v73 = vcvt.s32.f32 %v71
    %v74 = vmul.f32 %v66, %v72
    %v75 = vmul.f32 %v67, %v73
    %v76 = vld [vmem:[#allocation2] sm:$0xff]
    %v77 = vld [vmem:[#allocation2 + $0x8] sm:$0xff]
    %v78 = vadd.f32 %v76, %v74
    %v79 = vadd.f32 %v77, %v75
    %80 = vst [vmem:[#allocation2] sm:$0xff] %v78
    %81 = vst [vmem:[#allocation2 + $0x8] sm:$0xff] %v79
    %v82 = vld [vmem:[#allocation3] sm:$0xff]
    %v83 = vld [vmem:[#allocation3 + $0x8] sm:$0xff]
    %v84 = vadd.f32 %v82, %v66
    %v85 = vadd.f32 %v83, %v67
    %86 = vst [vmem:[#allocation3] sm:$0xff] %v84
    %87 = vst [vmem:[#allocation3 + $0x8] sm:$0xff] %v85
    %v88 = vld [vmem:[#allocation4] sm:$0xff]
    %v89 = vld [vmem:[#allocation4 + $0x8] sm:$0xff]
    %v90 = vadd.f32 %v88, %v72
    %v91 = vadd.f32 %v89, %v73
    %92 = vst [vmem:[#allocation4] sm:$0xff] %v90
    %93 = vst [vmem:[#allocation4 + $0x8] sm:$0xff] %v91
    // Predicated region
    $region22: #{tpu_custom_call.1} parent=1 // pred_check
      %p94 = pneg %p48
    $region23: #{tpu_custom_call.1} parent=1 // pred_check_branch
      %96 = sbr.rel (%p94) target = $region25
    $region24: #{tpu_custom_call.1} parent=1 // pred_region
      %v97 = vld [vmem:[#allocation2] sm:$0xff]
      %v98 = vld [vmem:[#allocation2 + $0x8] sm:$0xff]
      %99 = vadd.xlane.f32.xlu0 %v97
      %v100 = vpop.xlane.xlu0 %99
      %101 = vadd.xlane.f32.xlu0 %v98
      %v102 = vpop.xlane.xlu0 %101
      %v103 = vrot.slane %v100, 4
      %v104 = vadd.f32 %v100, %v103
      %v105 = vrot.slane %v104, 2
      %v106 = vadd.f32 %v104, %v105
      %v107 = vrot.slane %v106, 1
      %v108 = vadd.f32 %v106, %v107
      %v109 = vrot.slane %v102, 4
      %v110 = vadd.f32 %v102, %v109
      %v111 = vrot.slane %v110, 2
      %v112 = vadd.f32 %v110, %v111
      %v113 = vrot.slane %v112, 1
      %v114 = vadd.f32 %v112, %v113
      %v115 = vld [vmem:[#allocation3] sm:$0xff]
      %v116 = vld [vmem:[#allocation3 + $0x8] sm:$0xff]
      %117 = vadd.xlane.f32.xlu0 %v115
      %v118 = vpop.xlane.xlu0 %117
      %119 = vadd.xlane.f32.xlu0 %v116
      %v120 = vpop.xlane.xlu0 %119
      %v121 = vrot.slane %v118, 4
      %v122 = vadd.f32 %v118, %v121
      %v123 = vrot.slane %v122, 2
      %v124 = vadd.f32 %v122, %v123
      %v125 = vrot.slane %v124, 1
      %v126 = vadd.f32 %v124, %v125
      %v127 = vrot.slane %v120, 4
      %v128 = vadd.f32 %v120, %v127
      %v129 = vrot.slane %v128, 2
      %v130 = vadd.f32 %v128, %v129
      %v131 = vrot.slane %v130, 1
      %v132 = vadd.f32 %v130, %v131
      %v133 = vld [vmem:[#allocation4] sm:$0xff]
      %v134 = vld [vmem:[#allocation4 + $0x8] sm:$0xff]
      %135 = vadd.xlane.f32.xlu0 %v133
      %v136 = vpop.xlane.xlu0 %135
      %137 = vadd.xlane.f32.xlu0 %v134
      %v138 = vpop.xlane.xlu0 %137
      %v139 = vrot.slane %v136, 4
      %v140 = vadd.f32 %v136, %v139
      %v141 = vrot.slane %v140, 2
      %v142 = vadd.f32 %v140, %v141
      %v143 = vrot.slane %v142, 1
      %v144 = vadd.f32 %v142, %v143
      %v145 = vrot.slane %v138, 4
      %v146 = vadd.f32 %v138, %v145
      %v147 = vrot.slane %v146, 2
      %v148 = vadd.f32 %v146, %v147
      %v149 = vrot.slane %v148, 1
      %v150 = vadd.f32 %v148, %v149
      %v151 = vlaneseq
      %v152 = vshrl.u32 %v151, 7
      %vm153 = vcmp.eq.s32.totalorder %v152, 0
      %vm154 = vcmp.eq.s32.totalorder %v152, 1
      %vm155 = vcmp.eq.s32.totalorder %v152, 2
      %v156 = vsel %vm155, %v144, 0.0
      %v157 = vsel %vm155, %v150, 0.0
      %v158 = vsel %vm154, %v126, %v156
      %v159 = vsel %vm154, %v132, %v157
      %v160 = vsel %vm153, %v108, %v158
      %v161 = vsel %vm153, %v114, %v159
      %162 = vst [vmem:[#allocation10] sm:$0xff] %v160
      %163 = vst [vmem:[#allocation10 + $0x8] sm:$0xff] %v161
    $region25: #{tpu_custom_call.1} parent=1 // pred_fallthru
      _
    // Predicated region
    $region26: #{tpu_custom_call.1} parent=1 // pred_check
      _
    $region27: #{tpu_custom_call.1} parent=1 // pred_check_branch
      %165 = sbr.rel (0) target = $region29
    $region28: #{tpu_custom_call.1} parent=1 // pred_region
      %s167 = ssub.s32 256, 256
      %168 = vsyncadd [#allocation7], %s167
      %s169 = sshll.u32 [#allocation10], 4
      %s170 = int_to_ptr.vmem [resolvable:$true] %s169
      %175 = dma.vmem_to_hbm [thread:$0]  %s170, 256, %s2, [#allocation7], 128, 128, 8
    $region29: #{tpu_custom_call.1} parent=1 // pred_fallthru
      _
    // Predicated region
    $region30: #{tpu_custom_call.1} parent=1 // pred_check
      _
    $region31: #{tpu_custom_call.1} parent=1 // pred_check_branch
      %177 = sbr.rel (0) target = $region33
    $region32: #{tpu_custom_call.1} parent=1 // pred_region
      %178 = dma.done [#allocation7], 256
    $region33: #{tpu_custom_call.1} parent=1 // pred_fallthru
      _
    %179 = vsyncpa [#allocation6], 1
    %180 = vsyncpa [#allocation9], 1
    %181 = vsyncpa [#allocation7], 1

</llo_original>
